<compile_context>
chip_gen: v7x
topology: tpu7x:2x2x1
jax: 0.10.0
libtpu: 0.0.40
codegen_flags: <defaults>
</compile_context>

<pallas_src>
import jax
import jax.numpy as jnp
from jax.experimental import pallas as pl
from jax.experimental.pallas import tpu as pltpu


# ----------------------------- Pallas kernel -------------------------------


def fused_shallow_eval_kernel(patches_ref, w1_ref, b1_ref,
                              w2_ref, b2_ref,
                              wfc_ref, bfc_ref, pool_ref, o_ref):
    """Whole ShallowEval forward, all batch elements, one invocation.

    patches_ref: (9*Cin, N*H*W)     im2col patches of the zero-padded input
    w1_ref:      (Cmid, 9*Cin)      3x3 conv weight (im2col layout, bn_in scale folded in)
    b1_ref:      (Cmid, 1)          folded bn_in bias
    w2_ref:      (Cout, Cmid)       1x1 conv weight (bn_out scale folded in)
    b2_ref:      (Cout, 1)          folded bn_out bias
    wfc_ref:     (num_classes, Cout)  fc weight (PyTorch (out, in) layout)
    bfc_ref:     (num_classes, 1)     fc bias
    pool_ref:    (N*H*W, N)         block-averaging matrix (1/(H*W) per batch)
    o_ref:       (num_classes, N)   transposed logits (wrapper transposes back)
    """
    # conv_in (3x3, stride 1, pad 1) as one im2col matmul -> (Cmid, N*H*W)
    y = jnp.dot(w1_ref[...], patches_ref[...], preferred_element_type=jnp.float32)
    y = jnp.clip(y + b1_ref[...], 0.0, 6.0)                        # bn_in + relu6
    # conv_out (1x1)                                      -> (Cout, N*H*W)
    z = jnp.dot(w2_ref[...], y, preferred_element_type=jnp.float32)
    z = jnp.clip(z + b2_ref[...], 0.0, 6.0)                        # bn_out + relu6
    # adaptive_avg_pool2d(1), per batch element            -> (Cout, N)
    pooled = jnp.dot(z, pool_ref[...], preferred_element_type=jnp.float32)
    # fc, batched over N                                   -> (num_classes, N)
    logits = jnp.dot(wfc_ref[...], pooled, preferred_element_type=jnp.float32)
    o_ref[...] = logits + bfc_ref[...]


# ------------------------------- wrapper ------------------------------------


def _im2col_nchw(x_nchw):
    """(N, Cin, H, W) -> (9*Cin, N*H*W) patches for a 3x3 / stride-1 / pad-1 conv.

    K-axis order is (dh, dw, ci); lane-axis order is (n, h, w).
    """
    N, Cin, H, W = x_nchw.shape
    xp = jnp.pad(x_nchw, ((0, 0), (0, 0), (1, 1), (1, 1)))
    taps = [xp[:, :, dh:dh + H, dw:dw + W] for dh in range(3) for dw in range(3)]
    p = jnp.stack(taps, axis=1)                       # (N, 9, Cin, H, W)
    p = p.reshape(N, 9 * Cin, H * W)
    return jnp.transpose(p, (1, 0, 2)).reshape(9 * Cin, N * H * W)


def fold_bn(gamma, beta, mean, var, eps=1e-5):
    scale = gamma * jax.lax.rsqrt(var + eps)
    bias = beta - mean * scale
    return scale, bias


def prepare_params(p, N, H, W):
    """One-time (input-independent) operand prep: BN-fold, relayout, pool matrix."""
    Cmid, Cin = p["w_in"].shape[0], p["w_in"].shape[1]
    Cout = p["w_out"].shape[0]
    num_classes = p["fc_w"].shape[0]
    HW = H * W

    # TODO(synk): BasicBlock / config['block'] JSON are not provided in the
    # spec; the synthetic config uses an empty block list, so self.blocks is
    # the identity (nn.Sequential()).

    # Fold eval-mode BN scales directly into the conv weights (per output
    # channel == per row), keeping only a bias add in the kernel.
    w1 = jnp.transpose(p["w_in"], (0, 2, 3, 1)).reshape(Cmid, 9 * Cin)   # (Cmid, 9*Cin)
    w1 = w1 * p["s_in"][:, None]
    w2 = p["w_out"].reshape(Cout, Cmid) * p["s_out"][:, None]            # (Cout, Cmid)
    pool = jnp.repeat(jnp.eye(N, dtype=jnp.float32), HW, axis=0) / float(HW)  # (N*HW, N)

    return dict(
        w1=w1, b1=p["b_in"].reshape(Cmid, 1),
        w2=w2, b2=p["b_out"].reshape(Cout, 1),
        fc_w=p["fc_w"], fc_b=p["fc_b"].reshape(num_classes, 1),
        pool=pool,
    )


@jax.jit
def shallow_eval_forward(x_nchw, kp):
    """Jitted per-call path: im2col -> fused Pallas kernel -> transpose."""
    N, Cin, H, W = x_nchw.shape
    Cmid = kp["w1"].shape[0]
    Cout = kp["w2"].shape[0]
    num_classes = kp["fc_w"].shape[0]

    patches = _im2col_nchw(x_nchw)                                        # (9*Cin, N*HW)

    args = (
        patches,
        kp["w1"], kp["b1"],
        kp["w2"], kp["b2"],
        kp["fc_w"], kp["fc_b"],
        kp["pool"],
    )

    def full_spec(a):
        nd = a.ndim
        return pl.BlockSpec(a.shape, lambda i, _nd=nd: (0,) * _nd)

    logits_t = pl.pallas_call(
        fused_shallow_eval_kernel,
        out_shape=jax.ShapeDtypeStruct((num_classes, N), jnp.float32),
        grid_spec=pltpu.PrefetchScalarGridSpec(
            num_scalar_prefetch=0,
            grid=(1,),                                  # whole batch in one step
            in_specs=[full_spec(a) for a in args],
            out_specs=pl.BlockSpec((num_classes, N), lambda i: (0, 0)),
        ),
        compiler_params=pltpu.CompilerParams(dimension_semantics=("arbitrary",)),
    )(*args)
    return logits_t.T                                                     # (N, num_classes)


# --------------------------- pure-JAX reference ------------------------------


def shallow_eval_reference(x_nchw, p):
    x = jnp.transpose(x_nchw, (0, 2, 3, 1))
    w_in = jnp.transpose(p["w_in"], (2, 3, 1, 0))           # OIHW -> HWIO
    y = jax.lax.conv_general_dilated(
        x, w_in, (1, 1), "SAME", dimension_numbers=("NHWC", "HWIO", "NHWC"))
    y = jnp.clip(y * p["s_in"] + p["b_in"], 0.0, 6.0)
    w_out = jnp.transpose(p["w_out"], (2, 3, 1, 0))
    z = jax.lax.conv_general_dilated(
        y, w_out, (1, 1), "VALID", dimension_numbers=("NHWC", "HWIO", "NHWC"))
    z = jnp.clip(z * p["s_out"] + p["b_out"], 0.0, 6.0)
    pooled = jnp.mean(z, axis=(1, 2))
    return pooled @ p["fc_w"].T + p["fc_b"]


# --------------------------------- main --------------------------------------


if __name__ == "__main__":
    # small shapes: batch=2, input_channel=4, spatial=16x16,
    # conv_in -> 8 channels, conv_out -> 32 channels, num_classes=10
    N, C_IN, H, W = 2, 4, 16, 16
    C_MID, C_OUT, NUM_CLASSES = 8, 32, 10

    key = jax.random.PRNGKey(0)
    ks = jax.random.split(key, 12)

    x = jax.random.normal(ks[0], (N, C_IN, H, W), jnp.float32)

    w_in = jax.random.normal(ks[1], (C_MID, C_IN, 3, 3), jnp.float32) * 0.1
    g_in = 1.0 + 0.2 * jax.random.uniform(ks[2], (C_MID,), jnp.float32)
    b_in = 0.1 * jax.random.normal(ks[3], (C_MID,), jnp.float32)
    m_in = 0.1 * jax.random.normal(ks[4], (C_MID,), jnp.float32)
    v_in = 0.5 + jax.random.uniform(ks[5], (C_MID,), jnp.float32)
    s_in, bb_in = fold_bn(g_in, b_in, m_in, v_in)

    w_out = jax.random.normal(ks[6], (C_OUT, C_MID, 1, 1), jnp.float32) * 0.1
    g_out = 1.0 + 0.2 * jax.random.uniform(ks[7], (C_OUT,), jnp.float32)
    b_out = 0.1 * jax.random.normal(ks[8], (C_OUT,), jnp.float32)
    m_out = 0.1 * jax.random.normal(ks[9], (C_OUT,), jnp.float32)
    v_out = 0.5 + jax.random.uniform(ks[10], (C_OUT,), jnp.float32)
    s_out, bb_out = fold_bn(g_out, b_out, m_out, v_out)

    kfc_w, kfc_b = jax.random.split(ks[11])
    fc_w = jax.random.normal(kfc_w, (NUM_CLASSES, C_OUT), jnp.float32) * 0.1
    fc_b = jax.random.normal(kfc_b, (NUM_CLASSES,), jnp.float32) * 0.1

    params = dict(w_in=w_in, s_in=s_in, b_in=bb_in,
                  w_out=w_out, s_out=s_out, b_out=bb_out,
                  fc_w=fc_w, fc_b=fc_b)

    # One-time prep (BN folding, weight relayout, pool matrix), then a single
    # jitted dispatch per forward call.
    kernel_params = jax.tree_util.tree_map(jax.block_until_ready,
                                           prepare_params(params, N, H, W))

    out = shallow_eval_forward(x, kernel_params)
    out = jax.block_until_ready(out)

    ref = shallow_eval_reference(x, params)
    assert out.shape == (N, NUM_CLASSES)
    assert jnp.allclose(out, ref, rtol=1e-4, atol=1e-4), (out, ref)
    print("KERNEL_OK")
</pallas_src>

<mosaic_0001>
module attributes {stable_mosaic.version = 11 : i64} {
  func.func @fused_shallow_eval_kernel(%arg0: i32, %arg1: memref<36x512xf32, #tpu.memory_space<vmem>>, %arg2: memref<8x36xf32, #tpu.memory_space<vmem>>, %arg3: memref<8x1xf32, #tpu.memory_space<vmem>>, %arg4: memref<32x8xf32, #tpu.memory_space<vmem>>, %arg5: memref<32x1xf32, #tpu.memory_space<vmem>>, %arg6: memref<10x32xf32, #tpu.memory_space<vmem>>, %arg7: memref<10x1xf32, #tpu.memory_space<vmem>>, %arg8: memref<512x2xf32, #tpu.memory_space<vmem>>, %arg9: memref<10x2xf32, #tpu.memory_space<vmem>>) attributes {dimension_semantics = [#tpu.dimension_semantics<arbitrary>], iteration_bounds = array<i64: 1>, scalar_prefetch = 0 : i64, scratch_operands = 0 : i64, tpu.core_type = #tpu.core_type<tc>, window_params = [{pipeline_mode = #tpu.pipeline_mode<synchronous>, transform_indices = @transform_0, window_bounds = array<i64: 36, 512>}, {pipeline_mode = #tpu.pipeline_mode<synchronous>, transform_indices = @transform_1, window_bounds = array<i64: 8, 36>}, {pipeline_mode = #tpu.pipeline_mode<synchronous>, transform_indices = @transform_2, window_bounds = array<i64: 8, 1>}, {pipeline_mode = #tpu.pipeline_mode<synchronous>, transform_indices = @transform_3, window_bounds = array<i64: 32, 8>}, {pipeline_mode = #tpu.pipeline_mode<synchronous>, transform_indices = @transform_4, window_bounds = array<i64: 32, 1>}, {pipeline_mode = #tpu.pipeline_mode<synchronous>, transform_indices = @transform_5, window_bounds = array<i64: 10, 32>}, {pipeline_mode = #tpu.pipeline_mode<synchronous>, transform_indices = @transform_6, window_bounds = array<i64: 10, 1>}, {pipeline_mode = #tpu.pipeline_mode<synchronous>, transform_indices = @transform_7, window_bounds = array<i64: 512, 2>}, {pipeline_mode = #tpu.pipeline_mode<synchronous>, transform_indices = @transform_8, window_bounds = array<i64: 10, 2>}]} {
    %c0 = arith.constant 0 : index
    %c0_0 = arith.constant 0 : index
    %0 = vector.load %arg2[%c0, %c0_0] : memref<8x36xf32, #tpu.memory_space<vmem>>, vector<8x36xf32>
    %c0_1 = arith.constant 0 : index
    %c0_2 = arith.constant 0 : index
    %1 = vector.load %arg1[%c0_1, %c0_2] : memref<36x512xf32, #tpu.memory_space<vmem>>, vector<36x512xf32>
    %cst = arith.constant dense<0.000000e+00> : vector<8x512xf32>
    %2 = tpu.matmul %0, %1, %cst {dimension_numbers = #tpu.dot_dimension_numbers<[1], [0], [0], [1], [0, 0, 1, 1], [], []>} : vector<8x36xf32>, vector<36x512xf32>, vector<8x512xf32> -> vector<8x512xf32>
    %c0_3 = arith.constant 0 : index
    %c0_4 = arith.constant 0 : index
    %3 = vector.load %arg3[%c0_3, %c0_4] : memref<8x1xf32, #tpu.memory_space<vmem>>, vector<8x1xf32>
    %4 = vector.broadcast %3 : vector<8x1xf32> to vector<8x512xf32>
    %5 = arith.addf %2, %4 : vector<8x512xf32>
    %cst_5 = arith.constant 0.000000e+00 : f32
    %cst_6 = arith.constant 6.000000e+00 : f32
    %6 = vector.broadcast %cst_5 : f32 to vector<8x512xf32>
    %7 = arith.maximumf %6, %5 : vector<8x512xf32>
    %8 = vector.broadcast %cst_6 : f32 to vector<8x512xf32>
    %9 = arith.minimumf %8, %7 : vector<8x512xf32>
    %c0_7 = arith.constant 0 : index
    %c0_8 = arith.constant 0 : index
    %10 = vector.load %arg4[%c0_7, %c0_8] : memref<32x8xf32, #tpu.memory_space<vmem>>, vector<32x8xf32>
    %cst_9 = arith.constant dense<0.000000e+00> : vector<32x512xf32>
    %11 = tpu.matmul %10, %9, %cst_9 {dimension_numbers = #tpu.dot_dimension_numbers<[1], [0], [0], [1], [0, 0, 1, 1], [], []>} : vector<32x8xf32>, vector<8x512xf32>, vector<32x512xf32> -> vector<32x512xf32>
    %c0_10 = arith.constant 0 : index
    %c0_11 = arith.constant 0 : index
    %12 = vector.load %arg5[%c0_10, %c0_11] : memref<32x1xf32, #tpu.memory_space<vmem>>, vector<32x1xf32>
    %13 = vector.broadcast %12 : vector<32x1xf32> to vector<32x512xf32>
    %14 = arith.addf %11, %13 : vector<32x512xf32>
    %cst_12 = arith.constant 0.000000e+00 : f32
    %cst_13 = arith.constant 6.000000e+00 : f32
    %15 = vector.broadcast %cst_12 : f32 to vector<32x512xf32>
    %16 = arith.maximumf %15, %14 : vector<32x512xf32>
    %17 = vector.broadcast %cst_13 : f32 to vector<32x512xf32>
    %18 = arith.minimumf %17, %16 : vector<32x512xf32>
    %c0_14 = arith.constant 0 : index
    %c0_15 = arith.constant 0 : index
    %19 = vector.load %arg8[%c0_14, %c0_15] : memref<512x2xf32, #tpu.memory_space<vmem>>, vector<512x2xf32>
    %cst_16 = arith.constant dense<0.000000e+00> : vector<32x2xf32>
    %20 = tpu.matmul %18, %19, %cst_16 {dimension_numbers = #tpu.dot_dimension_numbers<[1], [0], [0], [1], [0, 0, 1, 1], [], []>} : vector<32x512xf32>, vector<512x2xf32>, vector<32x2xf32> -> vector<32x2xf32>
    %c0_17 = arith.constant 0 : index
    %c0_18 = arith.constant 0 : index
    %21 = vector.load %arg6[%c0_17, %c0_18] : memref<10x32xf32, #tpu.memory_space<vmem>>, vector<10x32xf32>
    %cst_19 = arith.constant dense<0.000000e+00> : vector<10x2xf32>
    %22 = tpu.matmul %21, %20, %cst_19 {dimension_numbers = #tpu.dot_dimension_numbers<[1], [0], [0], [1], [0, 0, 1, 1], [], []>} : vector<10x32xf32>, vector<32x2xf32>, vector<10x2xf32> -> vector<10x2xf32>
    %c0_20 = arith.constant 0 : index
    %c0_21 = arith.constant 0 : index
    %23 = vector.load %arg7[%c0_20, %c0_21] : memref<10x1xf32, #tpu.memory_space<vmem>>, vector<10x1xf32>
    %24 = vector.broadcast %23 : vector<10x1xf32> to vector<10x2xf32>
    %25 = arith.addf %22, %24 : vector<10x2xf32>
    %c0_22 = arith.constant 0 : index
    %c0_23 = arith.constant 0 : index
    %26 = vector.load %arg9[%c0_22, %c0_23] : memref<10x2xf32, #tpu.memory_space<vmem>>, vector<10x2xf32>
    tpu.vector_store %arg9[%c0_22, %c0_23], %25 {strides = array<i32>} : memref<10x2xf32, #tpu.memory_space<vmem>>, vector<10x2xf32>,
    return
  }
  func.func @transform_0(%arg0: i32) -> (i32, i32) {
    %c0_i32 = arith.constant 0 : i32
    %c0_i32_0 = arith.constant 0 : i32
    %c0_i32_1 = arith.constant 0 : i32
    return %c0_i32, %c0_i32_0 : i32, i32
  }
  func.func @transform_1(%arg0: i32) -> (i32, i32) {
    %c0_i32 = arith.constant 0 : i32
    %c0_i32_0 = arith.constant 0 : i32
    %c0_i32_1 = arith.constant 0 : i32
    return %c0_i32, %c0_i32_0 : i32, i32
  }
  func.func @transform_2(%arg0: i32) -> (i32, i32) {
    %c0_i32 = arith.constant 0 : i32
    %c0_i32_0 = arith.constant 0 : i32
    %c0_i32_1 = arith.constant 0 : i32
    return %c0_i32, %c0_i32_0 : i32, i32
  }
  func.func @transform_3(%arg0: i32) -> (i32, i32) {
    %c0_i32 = arith.constant 0 : i32
    %c0_i32_0 = arith.constant 0 : i32
    %c0_i32_1 = arith.constant 0 : i32
    return %c0_i32, %c0_i32_0 : i32, i32
  }
  func.func @transform_4(%arg0: i32) -> (i32, i32) {
    %c0_i32 = arith.constant 0 : i32
    %c0_i32_0 = arith.constant 0 : i32
    %c0_i32_1 = arith.constant 0 : i32
    return %c0_i32, %c0_i32_0 : i32, i32
  }
  func.func @transform_5(%arg0: i32) -> (i32, i32) {
    %c0_i32 = arith.constant 0 : i32
    %c0_i32_0 = arith.constant 0 : i32
    %c0_i32_1 = arith.constant 0 : i32
    return %c0_i32, %c0_i32_0 : i32, i32
  }
  func.func @transform_6(%arg0: i32) -> (i32, i32) {
    %c0_i32 = arith.constant 0 : i32
    %c0_i32_0 = arith.constant 0 : i32
    %c0_i32_1 = arith.constant 0 : i32
    return %c0_i32, %c0_i32_0 : i32, i32
  }
  func.func @transform_7(%arg0: i32) -> (i32, i32) {
    %c0_i32 = arith.constant 0 : i32
    %c0_i32_0 = arith.constant 0 : i32
    %c0_i32_1 = arith.constant 0 : i32
    return %c0_i32, %c0_i32_0 : i32, i32
  }
  func.func @transform_8(%arg0: i32) -> (i32, i32) {
    %c0_i32 = arith.constant 0 : i32
    %c0_i32_0 = arith.constant 0 : i32
    %c0_i32_1 = arith.constant 0 : i32
    return %c0_i32, %c0_i32_0 : i32, i32
  }
}

</mosaic_0001>

<llo_original>
// kernel: shallow_eval_forward.1
$region0: #{shallow_eval_forward.1}
  #allocation0 [shape = 'u32[]', space=smem, size = 0x4, offset = 0x4, fixed_abs, tag = 'smem constant byte address 0x4 - core index']
  #allocation1 [shape = 'u32[144,128]{1,0:T(1,128)}', space=vmem, size = 0x12000, scoped, tag = 'internal scratch']
  %s0 = inlined_call_operand.vmem [shape: f32[36,512], index: 0, kind: input, shape index: {}]
  %s1 = inlined_call_operand.vmem [shape: f32[8,36], index: 1, kind: input, shape index: {}]
  %s2 = inlined_call_operand.vmem [shape: f32[8,1], index: 2, kind: input, shape index: {}]
  %s3 = inlined_call_operand.vmem [shape: f32[32,8], index: 3, kind: input, shape index: {}]
  %s4 = inlined_call_operand.vmem [shape: f32[32,1], index: 4, kind: input, shape index: {}]
  %s5 = inlined_call_operand.vmem [shape: f32[10,32], index: 5, kind: input, shape index: {}]
  %s6 = inlined_call_operand.vmem [shape: f32[10,1], index: 6, kind: input, shape index: {}]
  %s7 = inlined_call_operand.vmem [shape: f32[512,2], index: 7, kind: input, shape index: {}]
  %s8 = inlined_call_operand.vmem [shape: f32[10,2], index: 8, kind: output, shape index: {}]
  %s9 = sld [smem:[#allocation0]]
  $region42: #{shallow_eval_forward.1} parent=0
    _
  %s11 = ssub.s32 1, %s9
  %s12 = scalar_select 0, %s11, %s9
  // Predicated region
  $region2: #{shallow_eval_forward.1} parent=0 // pred_check
    _
  $region3: #{shallow_eval_forward.1} parent=0 // pred_check_branch
    %14 = sbr.rel (0) target = $region5
  $region4: #{shallow_eval_forward.1} parent=0 // pred_region
    _
  $region5: #{shallow_eval_forward.1} parent=0 // pred_fallthru
    _
  // Predicated region
  $region6: #{shallow_eval_forward.1} parent=0 // pred_check
    _
  $region7: #{shallow_eval_forward.1} parent=0 // pred_check_branch
    %16 = sbr.rel (0) target = $region9
  $region8: #{shallow_eval_forward.1} parent=0 // pred_region
    _
  $region9: #{shallow_eval_forward.1} parent=0 // pred_fallthru
    _
  // Predicated region
  $region10: #{shallow_eval_forward.1} parent=0 // pred_check
    _
  $region11: #{shallow_eval_forward.1} parent=0 // pred_check_branch
    %18 = sbr.rel (0) target = $region13
  $region12: #{shallow_eval_forward.1} parent=0 // pred_region
    _
  $region13: #{shallow_eval_forward.1} parent=0 // pred_fallthru
    _
  // Predicated region
  $region14: #{shallow_eval_forward.1} parent=0 // pred_check
    _
  $region15: #{shallow_eval_forward.1} parent=0 // pred_check_branch
    %20 = sbr.rel (0) target = $region17
  $region16: #{shallow_eval_forward.1} parent=0 // pred_region
    _
  $region17: #{shallow_eval_forward.1} parent=0 // pred_fallthru
    _
  // Predicated region
  $region18: #{shallow_eval_forward.1} parent=0 // pred_check
    _
  $region19: #{shallow_eval_forward.1} parent=0 // pred_check_branch
    %22 = sbr.rel (0) target = $region21
  $region20: #{shallow_eval_forward.1} parent=0 // pred_region
    _
  $region21: #{shallow_eval_forward.1} parent=0 // pred_fallthru
    _
  // Predicated region
  $region22: #{shallow_eval_forward.1} parent=0 // pred_check
    _
  $region23: #{shallow_eval_forward.1} parent=0 // pred_check_branch
    %24 = sbr.rel (0) target = $region25
  $region24: #{shallow_eval_forward.1} parent=0 // pred_region
    _
  $region25: #{shallow_eval_forward.1} parent=0 // pred_fallthru
    _
  // Predicated region
  $region26: #{shallow_eval_forward.1} parent=0 // pred_check
    _
  $region27: #{shallow_eval_forward.1} parent=0 // pred_check_branch
    %26 = sbr.rel (0) target = $region29
  $region28: #{shallow_eval_forward.1} parent=0 // pred_region
    _
  $region29: #{shallow_eval_forward.1} parent=0 // pred_fallthru
    _
  // Predicated region
  $region30: #{shallow_eval_forward.1} parent=0 // pred_check
    _
  $region31: #{shallow_eval_forward.1} parent=0 // pred_check_branch
    %28 = sbr.rel (0) target = $region33
  $region32: #{shallow_eval_forward.1} parent=0 // pred_region
    _
  $region33: #{shallow_eval_forward.1} parent=0 // pred_fallthru
    _
  %v29 = vld [vmem:[%s1] sm:$0xff]
  %v30 = vld [vmem:[%s0] sm:$0xff]
  %v31 = vld [vmem:[%s0 + $0x8] sm:$0xff]
  %v32 = vld [vmem:[%s0 + $0x10] sm:$0xff]
  %v33 = vld [vmem:[%s0 + $0x18] sm:$0xff]
  %v34 = vld [vmem:[%s0 + $0x20] sm:$0xff]
  %v35 = vld [vmem:[%s0 + $0x28] sm:$0xff]
  %v36 = vld [vmem:[%s0 + $0x30] sm:$0xff]
  %v37 = vld [vmem:[%s0 + $0x38] sm:$0xff]
  %v38 = vld [vmem:[%s0 + $0x40] sm:$0xff]
  %v39 = vld [vmem:[%s0 + $0x48] sm:$0xff]
  %v40 = vld [vmem:[%s0 + $0x50] sm:$0xff]
  %v41 = vld [vmem:[%s0 + $0x58] sm:$0xff]
  %v42 = vld [vmem:[%s0 + $0x60] sm:$0xff]
  %v43 = vld [vmem:[%s0 + $0x68] sm:$0xff]
  %v44 = vld [vmem:[%s0 + $0x70] sm:$0xff]
  %v45 = vld [vmem:[%s0 + $0x78] sm:$0xff]
  %v46 = vld [vmem:[%s0 + $0x80] sm:$0xf]
  %v47 = vld [vmem:[%s0 + $0x88] sm:$0xf]
  %v48 = vld [vmem:[%s0 + $0x90] sm:$0xf]
  %v49 = vld [vmem:[%s0 + $0x98] sm:$0xf]
  %v50 = vld [vmem:[%s2] sm:$0xff]
  %52 = vset.pattern.permute.xlu0 0
  %53 = vperm.xlu0 %52, %v50
  %v54 = vpop.permute.xlu0 %53
  %vm56 = vcmask 293888
  %v58 = vsel %vm56, %v29, 0
  %vm60 = vcmask 1043456
  %v62 = vsel %vm60, %v46, 0
  %v65 = vsel %vm60, %v47, 0
  %v68 = vsel %vm60, %v48, 0
  %v71 = vsel %vm60, %v49, 0
  %73 = vmatprep.subr.mxu0 %v31
  %74 = vmatpush1.msra.mxu0 %v30
  %75 = vmatprep.subr.mxu0 %v35
  %76 = vmatpush1.msra.mxu0 %v34
  %77 = vmatprep.subr.mxu0 %v39
  %78 = vmatpush1.msra.mxu0 %v38
  %79 = vmatprep.subr.mxu0 %v43
  %80 = vmatpush1.msra.mxu0 %v42
  %81 = vmatprep.subr.mxu0 %v65
  %82 = vmatpush1.msra.mxu0 %v62
  %83 = vmatprep.subr.mxu0 0.0
  %84 = vmatpush1.msra.mxu0 0.0
  %85 = vmatprep.subr.mxu0 0.0
  %86 = vmatpush1.msra.mxu0 0.0
  %87 = vmatprep.subr.mxu0 0.0
  %88 = vmatpush1.msra.mxu0 0.0
  %89 = vmatprep.subr.mxu0 0.0
  %90 = vmatpush1.msra.mxu0 0.0
  %91 = vmatprep.subr.mxu0 0.0
  %92 = vmatpush1.msra.mxu0 0.0
  %93 = vmatprep.subr.mxu0 0.0
  %94 = vmatpush1.msra.mxu0 0.0
  %95 = vmatprep.subr.mxu0 0.0
  %96 = vmatpush1.msra.mxu0 0.0
  %97 = vmatprep.subr.mxu0 0.0
  %98 = vmatpush1.msra.mxu0 0.0
  %99 = vmatprep.subr.mxu0 0.0
  %100 = vmatpush1.msra.mxu0 0.0
  %101 = vmatprep.subr.mxu0 0.0
  %102 = vmatpush1.msra.mxu0 0.0
  %103 = vmatprep.subr.mxu0 0.0
  %104 = vmatpush1.msra.mxu0 0.0
  %105 = vmatprep.subr.mxu0 0.0
  %106 = vmatpush1.msra.mxu0 0.0
  %107 = vmatprep.subr.mxu0 0.0
  %108 = vmatpush1.msra.mxu0 0.0
  %109 = vmatprep.subr.mxu0 0.0
  %110 = vmatpush1.msra.mxu0 0.0
  %111 = vmatprep.subr.mxu0 0.0
  %112 = vmatpush1.msra.mxu0 0.0
  %113 = vmatprep.subr.mxu0 0.0
  %114 = vmatpush1.msra.mxu0 0.0
  %115 = vmatprep.subr.mxu0 0.0
  %116 = vmatpush1.msra.mxu0 0.0
  %117 = vmatprep.subr.mxu0 0.0
  %118 = vmatpush1.msra.mxu0 0.0
  %119 = vmatprep.subr.mxu0 0.0
  %120 = vmatpush1.msra.mxu0 0.0
  %121 = vmatprep.subr.mxu0 0.0
  %122 = vmatpush1.msra.mxu0 0.0
  %123 = vmatprep.subr.mxu0 0.0
  %124 = vmatpush1.msra.mxu0 0.0
  %125 = vmatprep.subr.mxu0 0.0
  %126 = vmatpush1.msra.mxu0 0.0
  %127 = vmatprep.subr.mxu0 0.0
  %128 = vmatpush1.msra.mxu0 0.0
  %129 = vmatprep.subr.mxu0 0.0
  %130 = vmatpush1.msra.mxu0 0.0
  %131 = vmatprep.subr.mxu0 0.0
  %132 = vmatpush1.msra.mxu0 0.0
  %133 = vmatprep.subr.mxu0 0.0
  %134 = vmatpush1.msra.mxu0 0.0
  %135 = vmatprep.subr.mxu0 0.0
  %136 = vmatpush1.msra.mxu0 0.0
  %137 = vmatprep.mubr.f32.mxu0 0.0
  %138 = vmatmul.mubr.f32.gmra.mrb[0].mxu0 %v58
  %v139 = vpop.f32.mrb[0].mxu0
  %v140 = vadd.f32 %v54, %v139
  %v141 = vpop.f32.mrb[0].mxu0
  %v142 = vadd.f32 %v54, %v141
  %143 = vdwg.mxu0
  %144 = vmatprep.subr.mxu0 %v33
  %145 = vmatpush1.msra.mxu0 %v32
  %146 = vmatprep.subr.mxu0 %v37
  %147 = vmatpush1.msra.mxu0 %v36
  %148 = vmatprep.subr.mxu0 %v41
  %149 = vmatpush1.msra.mxu0 %v40
  %150 = vmatprep.subr.mxu0 %v45
  %151 = vmatpush1.msra.mxu0 %v44
  %152 = vmatprep.subr.mxu0 %v71
  %153 = vmatpush1.msra.mxu0 %v68
  %154 = vmatprep.subr.mxu0 0.0
  %155 = vmatpush1.msra.mxu0 0.0
  %156 = vmatprep.subr.mxu0 0.0
  %157 = vmatpush1.msra.mxu0 0.0
  %158 = vmatprep.subr.mxu0 0.0
  %159 = vmatpush1.msra.mxu0 0.0
  %160 = vmatprep.subr.mxu0 0.0
  %161 = vmatpush1.msra.mxu0 0.0
  %162 = vmatprep.subr.mxu0 0.0
  %163 = vmatpush1.msra.mxu0 0.0
  %164 = vmatprep.subr.mxu0 0.0
  %165 = vmatpush1.msra.mxu0 0.0
  %166 = vmatprep.subr.mxu0 0.0
  %167 = vmatpush1.msra.mxu0 0.0
  %168 = vmatprep.subr.mxu0 0.0
  %169 = vmatpush1.msra.mxu0 0.0
  %170 = vmatprep.subr.mxu0 0.0
  %171 = vmatpush1.msra.mxu0 0.0
  %172 = vmatprep.subr.mxu0 0.0
  %173 = vmatpush1.msra.mxu0 0.0
  %174 = vmatprep.subr.mxu0 0.0
  %175 = vmatpush1.msra.mxu0 0.0
  %176 = vmatprep.subr.mxu0 0.0
  %177 = vmatpush1.msra.mxu0 0.0
  %178 = vmatprep.subr.mxu0 0.0
  %179 = vmatpush1.msra.mxu0 0.0
  %180 = vmatprep.subr.mxu0 0.0
  %181 = vmatpush1.msra.mxu0 0.0
  %182 = vmatprep.subr.mxu0 0.0
  %183 = vmatpush1.msra.mxu0 0.0
  %184 = vmatprep.subr.mxu0 0.0
  %185 = vmatpush1.msra.mxu0 0.0
  %186 = vmatprep.subr.mxu0 0.0
  %187 = vmatpush1.msra.mxu0 0.0
  %188 = vmatprep.subr.mxu0 0.0
  %189 = vmatpush1.msra.mxu0 0.0
  %190 = vmatprep.subr.mxu0 0.0
  %191 = vmatpush1.msra.mxu0 0.0
  %192 = vmatprep.subr.mxu0 0.0
  %193 = vmatpush1.msra.mxu0 0.0
  %194 = vmatprep.subr.mxu0 0.0
  %195 = vmatpush1.msra.mxu0 0.0
  %196 = vmatprep.subr.mxu0 0.0
  %197 = vmatpush1.msra.mxu0 0.0
  %198 = vmatprep.subr.mxu0 0.0
  %199 = vmatpush1.msra.mxu0 0.0
  %200 = vmatprep.subr.mxu0 0.0
  %201 = vmatpush1.msra.mxu0 0.0
  %202 = vmatprep.subr.mxu0 0.0
  %203 = vmatpush1.msra.mxu0 0.0
  %204 = vmatprep.subr.mxu0 0.0
  %205 = vmatpush1.msra.mxu0 0.0
  %206 = vmatprep.subr.mxu0 0.0
  %207 = vmatpush1.msra.mxu0 0.0
  %208 = vmatprep.mubr.f32.mxu0 0.0
  %209 = vmatmul.mubr.f32.gmra.mrb[0].mxu0 %v58
  %v210 = vpop.f32.mrb[0].mxu0
  %v211 = vadd.f32 %v54, %v210
  %v212 = vpop.f32.mrb[0].mxu0
  %v213 = vadd.f32 %v54, %v212
  %214 = vdwg.mxu0
  %v215 = vmax.f32 %v140, 0.0
  %v216 = vmax.f32 %v142, 0.0
  %v217 = vmax.f32 %v211, 0.0
  %v218 = vmax.f32 %v213, 0.0
  %v219 = vmin.f32 %v215, 6.0
  %v220 = vmin.f32 %v216, 6.0
  %v221 = vmin.f32 %v217, 6.0
  %v222 = vmin.f32 %v218, 6.0
  %v223 = vld [vmem:[%s3] sm:$0xff]
  %v224 = vld [vmem:[%s3 + $0x8] sm:$0xff]
  %v225 = vld [vmem:[%s3 + $0x10] sm:$0xff]
  %v226 = vld [vmem:[%s3 + $0x18] sm:$0xff]
  %v227 = vld [vmem:[%s4] sm:$0xff]
  %v228 = vld [vmem:[%s4 + $0x8] sm:$0xff]
  %v229 = vld [vmem:[%s4 + $0x10] sm:$0xff]
  %v230 = vld [vmem:[%s4 + $0x18] sm:$0xff]
  %232 = vset.pattern.permute.xlu0 0
  %233 = vperm.xlu0 %232, %v227
  %v234 = vpop.permute.xlu0 %233
  %237 = vset.pattern.permute.xlu0 0
  %238 = vperm.xlu0 %237, %v228
  %v239 = vpop.permute.xlu0 %238
  %242 = vset.pattern.permute.xlu0 0
  %243 = vperm.xlu0 %242, %v229
  %v244 = vpop.permute.xlu0 %243
  %247 = vset.pattern.permute.xlu0 0
  %248 = vperm.xlu0 %247, %v230
  %v249 = vpop.permute.xlu0 %248
  %vm251 = vcmask 64512
  %v253 = vsel %vm251, %v223, 0
  %v256 = vsel %vm251, %v224, 0
  %v259 = vsel %vm251, %v225, 0
  %v262 = vsel %vm251, %v226, 0
  %264 = vmatprep.subr.mxu0 %v220
  %265 = vmatpush1.msra.mxu0 %v219
  %266 = vmatprep.subr.mxu0 0.0
  %267 = vmatpush1.msra.mxu0 0.0
  %268 = vmatprep.subr.mxu0 0.0
  %269 = vmatpush1.msra.mxu0 0.0
  %270 = vmatprep.subr.mxu0 0.0
  %271 = vmatpush1.msra.mxu0 0.0
  %272 = vmatprep.subr.mxu0 0.0
  %273 = vmatpush1.msra.mxu0 0.0
  %274 = vmatprep.subr.mxu0 0.0
  %275 = vmatpush1.msra.mxu0 0.0
  %276 = vmatprep.subr.mxu0 0.0
  %277 = vmatpush1.msra.mxu0 0.0
  %278 = vmatprep.subr.mxu0 0.0
  %279 = vmatpush1.msra.mxu0 0.0
  %280 = vmatprep.subr.mxu0 0.0
  %281 = vmatpush1.msra.mxu0 0.0
  %282 = vmatprep.subr.mxu0 0.0
  %283 = vmatpush1.msra.mxu0 0.0
  %284 = vmatprep.subr.mxu0 0.0
  %285 = vmatpush1.msra.mxu0 0.0
  %286 = vmatprep.subr.mxu0 0.0
  %287 = vmatpush1.msra.mxu0 0.0
  %288 = vmatprep.subr.mxu0 0.0
  %289 = vmatpush1.msra.mxu0 0.0
  %290 = vmatprep.subr.mxu0 0.0
  %291 = vmatpush1.msra.mxu0 0.0
  %292 = vmatprep.subr.mxu0 0.0
  %293 = vmatpush1.msra.mxu0 0.0
  %294 = vmatprep.subr.mxu0 0.0
  %295 = vmatpush1.msra.mxu0 0.0
  %296 = vmatprep.subr.mxu0 0.0
  %297 = vmatpush1.msra.mxu0 0.0
  %298 = vmatprep.subr.mxu0 0.0
  %299 = vmatpush1.msra.mxu0 0.0
  %300 = vmatprep.subr.mxu0 0.0
  %301 = vmatpush1.msra.mxu0 0.0
  %302 = vmatprep.subr.mxu0 0.0
  %303 = vmatpush1.msra.mxu0 0.0
  %304 = vmatprep.subr.mxu0 0.0
  %305 = vmatpush1.msra.mxu0 0.0
  %306 = vmatprep.subr.mxu0 0.0
  %307 = vmatpush1.msra.mxu0 0.0
  %308 = vmatprep.subr.mxu0 0.0
  %309 = vmatpush1.msra.mxu0 0.0
  %310 = vmatprep.subr.mxu0 0.0
  %311 = vmatpush1.msra.mxu0 0.0
  %312 = vmatprep.subr.mxu0 0.0
  %313 = vmatpush1.msra.mxu0 0.0
  %314 = vmatprep.subr.mxu0 0.0
  %315 = vmatpush1.msra.mxu0 0.0
  %316 = vmatprep.subr.mxu0 0.0
  %317 = vmatpush1.msra.mxu0 0.0
  %318 = vmatprep.subr.mxu0 0.0
  %319 = vmatpush1.msra.mxu0 0.0
  %320 = vmatprep.subr.mxu0 0.0
  %321 = vmatpush1.msra.mxu0 0.0
  %322 = vmatprep.subr.mxu0 0.0
  %323 = vmatpush1.msra.mxu0 0.0
  %324 = vmatprep.subr.mxu0 0.0
  %325 = vmatpush1.msra.mxu0 0.0
  %326 = vmatprep.subr.mxu0 0.0
  %327 = vmatpush1.msra.mxu0 0.0
  %328 = vmatprep.mubr.f32.mxu0 0.0
  %329 = vmatmul.mubr.f32.gmra.mrb[0].mxu0 %v253
  %v330 = vpop.f32.mrb[0].mxu0
  %v331 = vadd.f32 %v234, %v330
  %v332 = vpop.f32.mrb[0].mxu0
  %v333 = vadd.f32 %v234, %v332
  %334 = vmatprep.mubr.f32.mxu0 0.0
  %335 = vmatmul.mubr.f32.gmra.mrb[0].mxu0 %v256
  %v336 = vpop.f32.mrb[0].mxu0
  %v337 = vadd.f32 %v239, %v336
  %v338 = vpop.f32.mrb[0].mxu0
  %v339 = vadd.f32 %v239, %v338
  %340 = vmatprep.mubr.f32.mxu0 0.0
  %341 = vmatmul.mubr.f32.gmra.mrb[0].mxu0 %v259
  %v342 = vpop.f32.mrb[0].mxu0
  %v343 = vadd.f32 %v244, %v342
  %v344 = vpop.f32.mrb[0].mxu0
  %v345 = vadd.f32 %v244, %v344
  %346 = vmatprep.mubr.f32.mxu0 0.0
  %347 = vmatmul.mubr.f32.gmra.mrb[0].mxu0 %v262
  %v348 = vpop.f32.mrb[0].mxu0
  %v349 = vadd.f32 %v249, %v348
  %v350 = vpop.f32.mrb[0].mxu0
  %v351 = vadd.f32 %v249, %v350
  %352 = vdwg.mxu0
  %353 = vmatprep.subr.mxu0 %v222
  %354 = vmatpush1.msra.mxu0 %v221
  %355 = vmatprep.subr.mxu0 0.0
  %356 = vmatpush1.msra.mxu0 0.0
  %357 = vmatprep.subr.mxu0 0.0
  %358 = vmatpush1.msra.mxu0 0.0
  %359 = vmatprep.subr.mxu0 0.0
  %360 = vmatpush1.msra.mxu0 0.0
  %361 = vmatprep.subr.mxu0 0.0
  %362 = vmatpush1.msra.mxu0 0.0
  %363 = vmatprep.subr.mxu0 0.0
  %364 = vmatpush1.msra.mxu0 0.0
  %365 = vmatprep.subr.mxu0 0.0
  %366 = vmatpush1.msra.mxu0 0.0
  %367 = vmatprep.subr.mxu0 0.0
  %368 = vmatpush1.msra.mxu0 0.0
  %369 = vmatprep.subr.mxu0 0.0
  %370 = vmatpush1.msra.mxu0 0.0
  %371 = vmatprep.subr.mxu0 0.0
  %372 = vmatpush1.msra.mxu0 0.0
  %373 = vmatprep.subr.mxu0 0.0
  %374 = vmatpush1.msra.mxu0 0.0
  %375 = vmatprep.subr.mxu0 0.0
  %376 = vmatpush1.msra.mxu0 0.0
  %377 = vmatprep.subr.mxu0 0.0
  %378 = vmatpush1.msra.mxu0 0.0
  %379 = vmatprep.subr.mxu0 0.0
  %380 = vmatpush1.msra.mxu0 0.0
  %381 = vmatprep.subr.mxu0 0.0
  %382 = vmatpush1.msra.mxu0 0.0
  %383 = vmatprep.subr.mxu0 0.0
  %384 = vmatpush1.msra.mxu0 0.0
  %385 = vmatprep.subr.mxu0 0.0
  %386 = vmatpush1.msra.mxu0 0.0
  %387 = vmatprep.subr.mxu0 0.0
  %388 = vmatpush1.msra.mxu0 0.0
  %389 = vmatprep.subr.mxu0 0.0
  %390 = vmatpush1.msra.mxu0 0.0
  %391 = vmatprep.subr.mxu0 0.0
  %392 = vmatpush1.msra.mxu0 0.0
  %393 = vmatprep.subr.mxu0 0.0
  %394 = vmatpush1.msra.mxu0 0.0
  %395 = vmatprep.subr.mxu0 0.0
  %396 = vmatpush1.msra.mxu0 0.0
  %397 = vmatprep.subr.mxu0 0.0
  %398 = vmatpush1.msra.mxu0 0.0
  %399 = vmatprep.subr.mxu0 0.0
  %400 = vmatpush1.msra.mxu0 0.0
  %401 = vmatprep.subr.mxu0 0.0
  %402 = vmatpush1.msra.mxu0 0.0
  %403 = vmatprep.subr.mxu0 0.0
  %404 = vmatpush1.msra.mxu0 0.0
  %405 = vmatprep.subr.mxu0 0.0
  %406 = vmatpush1.msra.mxu0 0.0
  %407 = vmatprep.subr.mxu0 0.0
  %408 = vmatpush1.msra.mxu0 0.0
  %409 = vmatprep.subr.mxu0 0.0
  %410 = vmatpush1.msra.mxu0 0.0
  %411 = vmatprep.subr.mxu0 0.0
  %412 = vmatpush1.msra.mxu0 0.0
  %413 = vmatprep.subr.mxu0 0.0
  %414 = vmatpush1.msra.mxu0 0.0
  %415 = vmatprep.subr.mxu0 0.0
  %416 = vmatpush1.msra.mxu0 0.0
  %417 = vmatprep.mubr.f32.mxu0 0.0
  %418 = vmatmul.mubr.f32.gmra.mrb[0].mxu0 %v253
  %v419 = vpop.f32.mrb[0].mxu0
  %v420 = vadd.f32 %v234, %v419
  %v421 = vpop.f32.mrb[0].mxu0
  %v422 = vadd.f32 %v234, %v421
  %423 = vmatprep.mubr.f32.mxu0 0.0
  %424 = vmatmul.mubr.f32.gmra.mrb[0].mxu0 %v256
  %v425 = vpop.f32.mrb[0].mxu0
  %v426 = vadd.f32 %v239, %v425
  %v427 = vpop.f32.mrb[0].mxu0
  %v428 = vadd.f32 %v239, %v427
  %429 = vmatprep.mubr.f32.mxu0 0.0
  %430 = vmatmul.mubr.f32.gmra.mrb[0].mxu0 %v259
  %v431 = vpop.f32.mrb[0].mxu0
  %v432 = vadd.f32 %v244, %v431
  %v433 = vpop.f32.mrb[0].mxu0
  %v434 = vadd.f32 %v244, %v433
  %435 = vmatprep.mubr.f32.mxu0 0.0
  %436 = vmatmul.mubr.f32.gmra.mrb[0].mxu0 %v262
  %v437 = vpop.f32.mrb[0].mxu0
  %v438 = vadd.f32 %v249, %v437
  %v439 = vpop.f32.mrb[0].mxu0
  %v440 = vadd.f32 %v249, %v439
  %441 = vdwg.mxu0
  %v442 = vmax.f32 %v331, 0.0
  %v443 = vmax.f32 %v333, 0.0
  %v444 = vmax.f32 %v420, 0.0
  %v445 = vmax.f32 %v422, 0.0
  %v446 = vmax.f32 %v337, 0.0
  %v447 = vmax.f32 %v339, 0.0
  %v448 = vmax.f32 %v426, 0.0
  %v449 = vmax.f32 %v428, 0.0
  %v450 = vmax.f32 %v343, 0.0
  %v451 = vmax.f32 %v345, 0.0
  %v452 = vmax.f32 %v432, 0.0
  %v453 = vmax.f32 %v434, 0.0
  %v454 = vmax.f32 %v349, 0.0
  %v455 = vmax.f32 %v351, 0.0
  %v456 = vmax.f32 %v438, 0.0
  %v457 = vmax.f32 %v440, 0.0
  %v458 = vmin.f32 %v442, 6.0
  %v459 = vmin.f32 %v443, 6.0
  %v460 = vmin.f32 %v444, 6.0
  %v461 = vmin.f32 %v445, 6.0
  %v462 = vmin.f32 %v446, 6.0
  %v463 = vmin.f32 %v447, 6.0
  %v464 = vmin.f32 %v448, 6.0
  %v465 = vmin.f32 %v449, 6.0
  %v466 = vmin.f32 %v450, 6.0
  %v467 = vmin.f32 %v451, 6.0
  %v468 = vmin.f32 %v452, 6.0
  %v469 = vmin.f32 %v453, 6.0
  %v470 = vmin.f32 %v454, 6.0
  %v471 = vmin.f32 %v455, 6.0
  %v472 = vmin.f32 %v456, 6.0
  %v473 = vmin.f32 %v457, 6.0
  %v474 = vld [vmem:[%s7] sm:$0xff]
  %v475 = vld [vmem:[%s7 + $0x8] sm:$0xff]
  %v476 = vld [vmem:[%s7 + $0x10] sm:$0xff]
  %v477 = vld [vmem:[%s7 + $0x18] sm:$0xff]
  %v478 = vld [vmem:[%s7 + $0x20] sm:$0xff]
  %v479 = vld [vmem:[%s7 + $0x28] sm:$0xff]
  %v480 = vld [vmem:[%s7 + $0x30] sm:$0xff]
  %v481 = vld [vmem:[%s7 + $0x38] sm:$0xff]
  %v482 = vld [vmem:[%s7 + $0x40] sm:$0xff]
  %v483 = vld [vmem:[%s7 + $0x48] sm:$0xff]
  %v484 = vld [vmem:[%s7 + $0x50] sm:$0xff]
  %v485 = vld [vmem:[%s7 + $0x58] sm:$0xff]
  %v486 = vld [vmem:[%s7 + $0x60] sm:$0xff]
  %v487 = vld [vmem:[%s7 + $0x68] sm:$0xff]
  %v488 = vld [vmem:[%s7 + $0x70] sm:$0xff]
  %v489 = vld [vmem:[%s7 + $0x78] sm:$0xff]
  %v490 = vld [vmem:[%s7 + $0x80] sm:$0xff]
  %v491 = vld [vmem:[%s7 + $0x88] sm:$0xff]
  %v492 = vld [vmem:[%s7 + $0x90] sm:$0xff]
  %v493 = vld [vmem:[%s7 + $0x98] sm:$0xff]
  %v494 = vld [vmem:[%s7 + $0xa0] sm:$0xff]
  %v495 = vld [vmem:[%s7 + $0xa8] sm:$0xff]
  %v496 = vld [vmem:[%s7 + $0xb0] sm:$0xff]
  %v497 = vld [vmem:[%s7 + $0xb8] sm:$0xff]
  %v498 = vld [vmem:[%s7 + $0xc0] sm:$0xff]
  %v499 = vld [vmem:[%s7 + $0xc8] sm:$0xff]
  %v500 = vld [vmem:[%s7 + $0xd0] sm:$0xff]
  %v501 = vld [vmem:[%s7 + $0xd8] sm:$0xff]
  %v502 = vld [vmem:[%s7 + $0xe0] sm:$0xff]
  %v503 = vld [vmem:[%s7 + $0xe8] sm:$0xff]
  %v504 = vld [vmem:[%s7 + $0xf0] sm:$0xff]
  %v505 = vld [vmem:[%s7 + $0xf8] sm:$0xff]
  %v506 = vld [vmem:[%s7 + $0x100] sm:$0xff]
  %v507 = vld [vmem:[%s7 + $0x108] sm:$0xff]
  %v508 = vld [vmem:[%s7 + $0x110] sm:$0xff]
  %v509 = vld [vmem:[%s7 + $0x118] sm:$0xff]
  %v510 = vld [vmem:[%s7 + $0x120] sm:$0xff]
  %v511 = vld [vmem:[%s7 + $0x128] sm:$0xff]
  %v512 = vld [vmem:[%s7 + $0x130] sm:$0xff]
  %v513 = vld [vmem:[%s7 + $0x138] sm:$0xff]
  %v514 = vld [vmem:[%s7 + $0x140] sm:$0xff]
  %v515 = vld [vmem:[%s7 + $0x148] sm:$0xff]
  %v516 = vld [vmem:[%s7 + $0x150] sm:$0xff]
  %v517 = vld [vmem:[%s7 + $0x158] sm:$0xff]
  %v518 = vld [vmem:[%s7 + $0x160] sm:$0xff]
  %v519 = vld [vmem:[%s7 + $0x168] sm:$0xff]
  %v520 = vld [vmem:[%s7 + $0x170] sm:$0xff]
  %v521 = vld [vmem:[%s7 + $0x178] sm:$0xff]
  %v522 = vld [vmem:[%s7 + $0x180] sm:$0xff]
  %v523 = vld [vmem:[%s7 + $0x188] sm:$0xff]
  %v524 = vld [vmem:[%s7 + $0x190] sm:$0xff]
  %v525 = vld [vmem:[%s7 + $0x198] sm:$0xff]
  %v526 = vld [vmem:[%s7 + $0x1a0] sm:$0xff]
  %v527 = vld [vmem:[%s7 + $0x1a8] sm:$0xff]
  %v528 = vld [vmem:[%s7 + $0x1b0] sm:$0xff]
  %v529 = vld [vmem:[%s7 + $0x1b8] sm:$0xff]
  %v530 = vld [vmem:[%s7 + $0x1c0] sm:$0xff]
  %v531 = vld [vmem:[%s7 + $0x1c8] sm:$0xff]
  %v532 = vld [vmem:[%s7 + $0x1d0] sm:$0xff]
  %v533 = vld [vmem:[%s7 + $0x1d8] sm:$0xff]
  %v534 = vld [vmem:[%s7 + $0x1e0] sm:$0xff]
  %v535 = vld [vmem:[%s7 + $0x1e8] sm:$0xff]
  %v536 = vld [vmem:[%s7 + $0x1f0] sm:$0xff]
  %v537 = vld [vmem:[%s7 + $0x1f8] sm:$0xff]
  %538 = vmatprep.subr.mxu0 0.0
  %539 = vmatpush1.msra.mxu0 %v474
  %540 = vmatprep.subr.mxu0 0.0
  %541 = vmatpush1.msra.mxu0 %v475
  %542 = vmatprep.subr.mxu0 0.0
  %543 = vmatpush1.msra.mxu0 %v476
  %544 = vmatprep.subr.mxu0 0.0
  %545 = vmatpush1.msra.mxu0 %v477
  %546 = vmatprep.subr.mxu0 0.0
  %547 = vmatpush1.msra.mxu0 %v478
  %548 = vmatprep.subr.mxu0 0.0
  %549 = vmatpush1.msra.mxu0 %v479
  %550 = vmatprep.subr.mxu0 0.0
  %551 = vmatpush1.msra.mxu0 %v480
  %552 = vmatprep.subr.mxu0 0.0
  %553 = vmatpush1.msra.mxu0 %v481
  %554 = vmatprep.subr.mxu0 0.0
  %555 = vmatpush1.msra.mxu0 %v482
  %556 = vmatprep.subr.mxu0 0.0
  %557 = vmatpush1.msra.mxu0 %v483
  %558 = vmatprep.subr.mxu0 0.0
  %559 = vmatpush1.msra.mxu0 %v484
  %560 = vmatprep.subr.mxu0 0.0
  %561 = vmatpush1.msra.mxu0 %v485
  %562 = vmatprep.subr.mxu0 0.0
  %563 = vmatpush1.msra.mxu0 %v486
  %564 = vmatprep.subr.mxu0 0.0
  %565 = vmatpush1.msra.mxu0 %v487
  %566 = vmatprep.subr.mxu0 0.0
  %567 = vmatpush1.msra.mxu0 %v488
  %568 = vmatprep.subr.mxu0 0.0
  %569 = vmatpush1.msra.mxu0 %v489
  %570 = vmatprep.subr.mxu0 0.0
  %571 = vmatpush1.msra.mxu0 %v490
  %572 = vmatprep.subr.mxu0 0.0
  %573 = vmatpush1.msra.mxu0 %v491
  %574 = vmatprep.subr.mxu0 0.0
  %575 = vmatpush1.msra.mxu0 %v492
  %576 = vmatprep.subr.mxu0 0.0
  %577 = vmatpush1.msra.mxu0 %v493
  %578 = vmatprep.subr.mxu0 0.0
  %579 = vmatpush1.msra.mxu0 %v494
  %580 = vmatprep.subr.mxu0 0.0
  %581 = vmatpush1.msra.mxu0 %v495
  %582 = vmatprep.subr.mxu0 0.0
  %583 = vmatpush1.msra.mxu0 %v496
  %584 = vmatprep.subr.mxu0 0.0
  %585 = vmatpush1.msra.mxu0 %v497
  %586 = vmatprep.subr.mxu0 0.0
  %587 = vmatpush1.msra.mxu0 %v498
  %588 = vmatprep.subr.mxu0 0.0
  %589 = vmatpush1.msra.mxu0 %v499
  %590 = vmatprep.subr.mxu0 0.0
  %591 = vmatpush1.msra.mxu0 %v500
  %592 = vmatprep.subr.mxu0 0.0
  %593 = vmatpush1.msra.mxu0 %v501
  %594 = vmatprep.subr.mxu0 0.0
  %595 = vmatpush1.msra.mxu0 %v502
  %596 = vmatprep.subr.mxu0 0.0
  %597 = vmatpush1.msra.mxu0 %v503
  %598 = vmatprep.subr.mxu0 0.0
  %599 = vmatpush1.msra.mxu0 %v504
  %600 = vmatprep.subr.mxu0 0.0
  %601 = vmatpush1.msra.mxu0 %v505
  %602 = vmatprep.mubr.f32.mxu0 %v459
  %603 = vmatmul.mubr.f32.gmra.mrb[0].mxu0 %v458
  %v604 = vpop.f32.mrb[0].mxu0
  %v605 = vadd.f32 0.0, %v604
  %v606 = vpop.f32.mrb[0].mxu0
  %607 = vmatprep.mubr.f32.mxu0 %v463
  %608 = vmatmul.mubr.f32.gmra.mrb[0].mxu0 %v462
  %v609 = vpop.f32.mrb[0].mxu0
  %v610 = vadd.f32 0.0, %v609
  %v611 = vpop.f32.mrb[0].mxu0
  %612 = vmatprep.mubr.f32.mxu0 %v467
  %613 = vmatmul.mubr.f32.gmra.mrb[0].mxu0 %v466
  %v614 = vpop.f32.mrb[0].mxu0
  %v615 = vadd.f32 0.0, %v614
  %v616 = vpop.f32.mrb[0].mxu0
  %617 = vmatprep.mubr.f32.mxu0 %v471
  %618 = vmatmul.mubr.f32.gmra.mrb[0].mxu0 %v470
  %v619 = vpop.f32.mrb[0].mxu0
  %v620 = vadd.f32 0.0, %v619
  %v621 = vpop.f32.mrb[0].mxu0
  %622 = vdwg.mxu0
  %623 = vmatprep.subr.mxu0 0.0
  %624 = vmatpush1.msra.mxu0 %v506
  %625 = vmatprep.subr.mxu0 0.0
  %626 = vmatpush1.msra.mxu0 %v507
  %627 = vmatprep.subr.mxu0 0.0
  %628 = vmatpush1.msra.mxu0 %v508
  %629 = vmatprep.subr.mxu0 0.0
  %630 = vmatpush1.msra.mxu0 %v509
  %631 = vmatprep.subr.mxu0 0.0
  %632 = vmatpush1.msra.mxu0 %v510
  %633 = vmatprep.subr.mxu0 0.0
  %634 = vmatpush1.msra.mxu0 %v511
  %635 = vmatprep.subr.mxu0 0.0
  %636 = vmatpush1.msra.mxu0 %v512
  %637 = vmatprep.subr.mxu0 0.0
  %638 = vmatpush1.msra.mxu0 %v513
  %639 = vmatprep.subr.mxu0 0.0
  %640 = vmatpush1.msra.mxu0 %v514
  %641 = vmatprep.subr.mxu0 0.0
  %642 = vmatpush1.msra.mxu0 %v515
  %643 = vmatprep.subr.mxu0 0.0
  %644 = vmatpush1.msra.mxu0 %v516
  %645 = vmatprep.subr.mxu0 0.0
  %646 = vmatpush1.msra.mxu0 %v517
  %647 = vmatprep.subr.mxu0 0.0
  %648 = vmatpush1.msra.mxu0 %v518
  %649 = vmatprep.subr.mxu0 0.0
  %650 = vmatpush1.msra.mxu0 %v519
  %651 = vmatprep.subr.mxu0 0.0
  %652 = vmatpush1.msra.mxu0 %v520
  %653 = vmatprep.subr.mxu0 0.0
  %654 = vmatpush1.msra.mxu0 %v521
  %655 = vmatprep.subr.mxu0 0.0
  %656 = vmatpush1.msra.mxu0 %v522
  %657 = vmatprep.subr.mxu0 0.0
  %658 = vmatpush1.msra.mxu0 %v523
  %659 = vmatprep.subr.mxu0 0.0
  %660 = vmatpush1.msra.mxu0 %v524
  %661 = vmatprep.subr.mxu0 0.0
  %662 = vmatpush1.msra.mxu0 %v525
  %663 = vmatprep.subr.mxu0 0.0
  %664 = vmatpush1.msra.mxu0 %v526
  %665 = vmatprep.subr.mxu0 0.0
  %666 = vmatpush1.msra.mxu0 %v527
  %667 = vmatprep.subr.mxu0 0.0
  %668 = vmatpush1.msra.mxu0 %v528
  %669 = vmatprep.subr.mxu0 0.0
  %670 = vmatpush1.msra.mxu0 %v529
  %671 = vmatprep.subr.mxu0 0.0
  %672 = vmatpush1.msra.mxu0 %v530
  %673 = vmatprep.subr.mxu0 0.0
  %674 = vmatpush1.msra.mxu0 %v531
  %675 = vmatprep.subr.mxu0 0.0
  %676 = vmatpush1.msra.mxu0 %v532
  %677 = vmatprep.subr.mxu0 0.0
  %678 = vmatpush1.msra.mxu0 %v533
  %679 = vmatprep.subr.mxu0 0.0
  %680 = vmatpush1.msra.mxu0 %v534
  %681 = vmatprep.subr.mxu0 0.0
  %682 = vmatpush1.msra.mxu0 %v535
  %683 = vmatprep.subr.mxu0 0.0
  %684 = vmatpush1.msra.mxu0 %v536
  %685 = vmatprep.subr.mxu0 0.0
  %686 = vmatpush1.msra.mxu0 %v537
  %687 = vmatprep.mubr.f32.mxu0 %v461
  %688 = vmatmul.mubr.f32.gmra.mrb[0].mxu0 %v460
  %v689 = vpop.f32.mrb[0].mxu0
  %v690 = vadd.f32 %v605, %v689
  %v691 = vpop.f32.mrb[0].mxu0
  %692 = vmatprep.mubr.f32.mxu0 %v465
  %693 = vmatmul.mubr.f32.gmra.mrb[0].mxu0 %v464
  %v694 = vpop.f32.mrb[0].mxu0
  %v695 = vadd.f32 %v610, %v694
  %v696 = vpop.f32.mrb[0].mxu0
  %697 = vmatprep.mubr.f32.mxu0 %v469
  %698 = vmatmul.mubr.f32.gmra.mrb[0].mxu0 %v468
  %v699 = vpop.f32.mrb[0].mxu0
  %v700 = vadd.f32 %v615, %v699
  %v701 = vpop.f32.mrb[0].mxu0
  %702 = vmatprep.mubr.f32.mxu0 %v473
  %703 = vmatmul.mubr.f32.gmra.mrb[0].mxu0 %v472
  %v704 = vpop.f32.mrb[0].mxu0
  %v705 = vadd.f32 %v620, %v704
  %v706 = vpop.f32.mrb[0].mxu0
  %707 = vdwg.mxu0
  %v708 = vld [vmem:[%s5] sm:$0xff]
  %v709 = vld [vmem:[%s5 + $0x8] sm:$0x3]
  %v710 = vld [vmem:[%s6] sm:$0xff]
  %v711 = vld [vmem:[%s6 + $0x8] sm:$0x3]
  %713 = vset.pattern.permute.xlu0 0
  %714 = vperm.xlu0 %713, %v710
  %v715 = vpop.permute.xlu0 %714
  %718 = vset.pattern.permute.xlu0 0
  %719 = vperm.xlu0 %718, %v711
  %v720 = vpop.permute.xlu0 %719
  %vm722 = vcmask 261120
  %v724 = vsel %vm722, %v708, 0
  %v727 = vsel %vm722, %v709, 0
  %729 = vmatprep.subr.mxu0 0.0
  %730 = vmatpush1.msra.mxu0 %v690
  %731 = vmatprep.subr.mxu0 0.0
  %732 = vmatpush1.msra.mxu0 %v695
  %733 = vmatprep.subr.mxu0 0.0
  %734 = vmatpush1.msra.mxu0 %v700
  %735 = vmatprep.subr.mxu0 0.0
  %736 = vmatpush1.msra.mxu0 %v705
  %737 = vmatprep.subr.mxu0 0.0
  %738 = vmatpush1.msra.mxu0 0.0
  %739 = vmatprep.subr.mxu0 0.0
  %740 = vmatpush1.msra.mxu0 0.0
  %741 = vmatprep.subr.mxu0 0.0
  %742 = vmatpush1.msra.mxu0 0.0
  %743 = vmatprep.subr.mxu0 0.0
  %744 = vmatpush1.msra.mxu0 0.0
  %745 = vmatprep.subr.mxu0 0.0
  %746 = vmatpush1.msra.mxu0 0.0
  %747 = vmatprep.subr.mxu0 0.0
  %748 = vmatpush1.msra.mxu0 0.0
  %749 = vmatprep.subr.mxu0 0.0
  %750 = vmatpush1.msra.mxu0 0.0
  %751 = vmatprep.subr.mxu0 0.0
  %752 = vmatpush1.msra.mxu0 0.0
  %753 = vmatprep.subr.mxu0 0.0
  %754 = vmatpush1.msra.mxu0 0.0
  %755 = vmatprep.subr.mxu0 0.0
  %756 = vmatpush1.msra.mxu0 0.0
  %757 = vmatprep.subr.mxu0 0.0
  %758 = vmatpush1.msra.mxu0 0.0
  %759 = vmatprep.subr.mxu0 0.0
  %760 = vmatpush1.msra.mxu0 0.0
  %761 = vmatprep.subr.mxu0 0.0
  %762 = vmatpush1.msra.mxu0 0.0
  %763 = vmatprep.subr.mxu0 0.0
  %764 = vmatpush1.msra.mxu0 0.0
  %765 = vmatprep.subr.mxu0 0.0
  %766 = vmatpush1.msra.mxu0 0.0
  %767 = vmatprep.subr.mxu0 0.0
  %768 = vmatpush1.msra.mxu0 0.0
  %769 = vmatprep.subr.mxu0 0.0
  %770 = vmatpush1.msra.mxu0 0.0
  %771 = vmatprep.subr.mxu0 0.0
  %772 = vmatpush1.msra.mxu0 0.0
  %773 = vmatprep.subr.mxu0 0.0
  %774 = vmatpush1.msra.mxu0 0.0
  %775 = vmatprep.subr.mxu0 0.0
  %776 = vmatpush1.msra.mxu0 0.0
  %777 = vmatprep.subr.mxu0 0.0
  %778 = vmatpush1.msra.mxu0 0.0
  %779 = vmatprep.subr.mxu0 0.0
  %780 = vmatpush1.msra.mxu0 0.0
  %781 = vmatprep.subr.mxu0 0.0
  %782 = vmatpush1.msra.mxu0 0.0
  %783 = vmatprep.subr.mxu0 0.0
  %784 = vmatpush1.msra.mxu0 0.0
  %785 = vmatprep.subr.mxu0 0.0
  %786 = vmatpush1.msra.mxu0 0.0
  %787 = vmatprep.subr.mxu0 0.0
  %788 = vmatpush1.msra.mxu0 0.0
  %789 = vmatprep.subr.mxu0 0.0
  %790 = vmatpush1.msra.mxu0 0.0
  %791 = vmatprep.subr.mxu0 0.0
  %792 = vmatpush1.msra.mxu0 0.0
  %793 = vmatprep.mubr.f32.mxu0 0.0
  %794 = vmatmul.mubr.f32.gmra.mrb[0].mxu0 %v724
  %v795 = vpop.f32.mrb[0].mxu0
  %v796 = vadd.f32 %v715, %v795
  %v797 = vpop.f32.mrb[0].mxu0
  %798 = vmatprep.mubr.f32.mxu0 0.0
  %799 = vmatmul.mubr.f32.gmra.mrb[0].mxu0 %v727
  %v800 = vpop.f32.mrb[0].mxu0
  %v801 = vadd.f32 %v720, %v800
  %v802 = vpop.f32.mrb[0].mxu0
  %803 = vdwg.mxu0
  %vm804 = vcmask 15360
  %805 = vst.msk [vmem:[%s8] sm:$0xff] %vm804, %v796
  %vm806 = vcmask 9216
  %807 = vst.msk [vmem:[%s8 + $0x8] sm:$0x3] %vm806, %v801
  // Predicated region
  $region34: #{shallow_eval_forward.1} parent=0 // pred_check
    _
  $region35: #{shallow_eval_forward.1} parent=0 // pred_check_branch
    %809 = sbr.rel (0) target = $region37
  $region36: #{shallow_eval_forward.1} parent=0 // pred_region
    _
  $region37: #{shallow_eval_forward.1} parent=0 // pred_fallthru
    _
  // Predicated region
  $region38: #{shallow_eval_forward.1} parent=0 // pred_check
    _
  $region39: #{shallow_eval_forward.1} parent=0 // pred_check_branch
    %811 = sbr.rel (0) target = $region41
  $region40: #{shallow_eval_forward.1} parent=0 // pred_region
    _
  $region41: #{shallow_eval_forward.1} parent=0 // pred_fallthru
    _

</llo_original>
